<compile_context>
chip_gen: v7x
topology: tpu7x:2x2x1
jax: 0.10.0
libtpu: 0.0.40
codegen_flags: <defaults>
</compile_context>

<pallas_src>
import functools

import jax
import jax.numpy as jnp
from jax.experimental import pallas as pl
from jax.experimental.pallas import tpu as pltpu

LANE = 128


def _round_up(a, m):
    return (a + m - 1) // m * m


def _vmem_capacity_bytes():
    """Per-TensorCore VMEM capacity; conservative fallback if query fails."""
    try:
        return int(pltpu.get_tpu_info().vmem_capacity_bytes)
    except Exception:
        return 64 * 1024 * 1024  # v7x has the smallest budget (64 MiB / TC)


def _pick_l_tile(l_pad, l_tile_max, per_col_bytes, fixed_bytes,
                 soft_budget, hard_budget, batch):
    """Largest lane-dense tile that divides the 128-padded length and fits VMEM."""
    m = l_pad // LANE
    cands = [d * LANE for d in range(1, m + 1)
             if m % d == 0 and d * LANE <= l_tile_max]
    l_tile = LANE
    for cand in cands:  # ascending; keep the largest that fits the soft budget
        if fixed_bytes + per_col_bytes * cand <= soft_budget:
            l_tile = cand
    # MXU N-occupancy floor: don't let the heuristic drive the lane dim below
    # 256 if a 256-wide tile still fits the hard VMEM limit.
    if l_tile < 256 and 256 in cands and \
            fixed_bytes + per_col_bytes * 256 <= hard_budget:
        l_tile = 256
    # Guarantee >= 2 grid steps so both v7x TensorCores get work (floor 256).
    while batch * (l_pad // l_tile) < 2 and l_tile >= 512 and l_tile % 256 == 0:
        l_tile //= 2
    return l_tile


def resblock_kernel(x_ref, edges_ref, w2_ref, b_ref, o_ref, stk_ref):
    # x_ref:     (1, Cp, LT)   f32  activations for this (batch, length-tile)
    # edges_ref: (1, 1, Cp, 2) f32  pre-ReLU halo columns [left, right]
    # w2_ref:    (Cp, 3*Cp)    bf16/f32 fused conv taps [w_k0 | w_k1 | w_k2]
    # b_ref:     (Cp, 1)       f32  bias
    # o_ref:     (1, Cp, LT)   f32
    # stk_ref:   (3*Cp, LT)    bf16/f32 VMEM scratch: MXU operand
    C = x_ref.shape[1]
    LT = x_ref.shape[2]
    mm_dtype = stk_ref.dtype

    x = x_ref[0]                              # (Cp, LT) f32
    h = jnp.maximum(x, 0.0)                   # ReLU in f32 (v5e has no bf16 VALU)

    halo = jnp.maximum(edges_ref[0, 0], 0.0)  # (Cp, 2) ReLU'd halo columns, f32

    # Build the fused K=3*Cp operand [h[t-1]; h[t]; h[t+1]] directly in the
    # scratch: slice stores instead of concatenate, single-column halo patches
    # instead of iota/compare/select.  Rolls are XLU work (free slot); the
    # cast to the matmul dtype is fused into each tap store.
    stk_ref[0:C, :] = pltpu.roll(h, 1, axis=1).astype(mm_dtype)            # h[t-1]
    stk_ref[0:C, 0:1] = halo[:, 0:1].astype(mm_dtype)                      # left halo
    stk_ref[C:2 * C, :] = h.astype(mm_dtype)                               # h[t]
    stk_ref[2 * C:3 * C, :] = pltpu.roll(h, LT - 1, axis=1).astype(mm_dtype)  # h[t+1]
    stk_ref[2 * C:3 * C, LT - 1:LT] = halo[:, 1:2].astype(mm_dtype)        # right halo

    # Single MXU matmul over the fused contraction; accumulate in f32.
    y = jnp.dot(w2_ref[...], stk_ref[...], preferred_element_type=jnp.float32)

    # Bias + residual combine in f32, single cast at the final store.
    o_ref[0] = (x + 0.3 * (y + b_ref[...])).astype(o_ref.dtype)


@functools.partial(
    jax.jit,
    static_argnames=("l_tile_max", "use_bf16", "single_buffer_invariants"))
def _resblock_impl(x, w, b, *, l_tile_max, use_bf16, single_buffer_invariants):
    B, C, L = x.shape
    mm_dtype = jnp.bfloat16 if use_bf16 else jnp.float32
    mm_bytes = 2 if use_bf16 else 4

    # Channel padding so the tap boundaries inside the (3*Cp, LT) scratch land
    # on sublane multiples (16 rows for bf16, 8 for f32) -> pure-copy stores.
    Cp = _round_up(C, 16 if use_bf16 else 8)

    # Lane-dense length tiling: tiles are multiples of 128 that DIVIDE the
    # 128-padded length, so no second round-up / extra re-pad HBM pass.
    l_pad = _round_up(L, LANE)

    # Generation-aware VMEM budgets.
    vmem_cap = _vmem_capacity_bytes()
    vmem_limit = (vmem_cap * 3) // 4                       # 48 MiB v7x, 96 MiB v5e/v6e
    soft_budget = (24 * 1024 * 1024 if vmem_cap <= 64 * 1024 * 1024
                   else vmem_cap // 2)                     # tile-size clamp
    hard_budget = (vmem_limit * 9) // 10

    # Per-column VMEM: double-buffered x tile + output tile (f32), the scratch
    # operand, and ~4 in-kernel f32 temporaries.
    per_col = Cp * (2 * 4 + 2 * 4 + 3 * mm_bytes + 4 * 4)
    # Grid-invariant operands (weights dominate): counted once if they can be
    # single-buffered, twice otherwise.
    w_bufs = 1 if single_buffer_invariants else 2
    fixed = w_bufs * (Cp * 3 * Cp * mm_bytes) + 2 * Cp * 4 + 2 * Cp * 2 * 4

    l_tile = _pick_l_tile(l_pad, max(l_tile_max, LANE), per_col, fixed,
                          soft_budget, hard_budget, B)
    n_lt = l_pad // l_tile

    # Pad only when needed (padding is an extra HBM pass for a mem-bound op).
    pad_c, pad_l = Cp - C, l_pad - L
    xp = x if (pad_c == 0 and pad_l == 0) else jnp.pad(
        x, ((0, 0), (0, pad_c), (0, pad_l)))
    wp = w if pad_c == 0 else jnp.pad(w, ((0, pad_c), (0, pad_c), (0, 0)))
    bp = b if pad_c == 0 else jnp.pad(b, ((0, pad_c),))

    # Pre-ReLU halo columns per length tile:
    #   left  halo of tile li = xp[:, :, li*l_tile - 1]   (0 for li == 0)
    #   right halo of tile li = xp[:, :, (li+1)*l_tile]   (0 for the last tile)
    zeros_col = jnp.zeros((B, Cp, 1), dtype=xp.dtype)
    if n_lt > 1:
        left_cols = jnp.concatenate(
            [zeros_col, xp[:, :, l_tile - 1::l_tile][:, :, : n_lt - 1]], axis=2)
        right_cols = jnp.concatenate(
            [xp[:, :, l_tile::l_tile], zeros_col], axis=2)
    else:
        left_cols = zeros_col
        right_cols = zeros_col
    edges = jnp.stack([left_cols, right_cols], axis=-1)   # (B, Cp, n_lt, 2)
    edges = jnp.transpose(edges, (0, 2, 1, 3))            # (B, n_lt, Cp, 2)

    # Fused tap-major weights: (Cp, 3*Cp) = [w[:,:,0] | w[:,:,1] | w[:,:,2]].
    w2 = jnp.concatenate([wp[:, :, 0], wp[:, :, 1], wp[:, :, 2]],
                         axis=1).astype(mm_dtype)
    b_col = bp.reshape(Cp, 1).astype(jnp.float32)

    # Grid-invariant inputs: request a single VMEM buffer (double-buffering an
    # invariant weight is pure VMEM waste).
    inv_kw = dict(pipeline_mode=pl.Buffered(1)) if single_buffer_invariants else {}

    out = pl.pallas_call(
        resblock_kernel,
        out_shape=jax.ShapeDtypeStruct((B, Cp, l_pad), x.dtype),
        grid_spec=pltpu.PrefetchScalarGridSpec(
            num_scalar_prefetch=0,
            grid=(B, n_lt),
            in_specs=[
                pl.BlockSpec((1, Cp, l_tile), lambda bi, li: (bi, 0, li)),
                pl.BlockSpec((1, 1, Cp, 2), lambda bi, li: (bi, li, 0, 0)),
                pl.BlockSpec((Cp, 3 * Cp), lambda bi, li: (0, 0), **inv_kw),
                pl.BlockSpec((Cp, 1), lambda bi, li: (0, 0), **inv_kw),
            ],
            out_specs=pl.BlockSpec((1, Cp, l_tile), lambda bi, li: (bi, 0, li)),
            scratch_shapes=[pltpu.VMEM((3 * Cp, l_tile), mm_dtype)],
        ),
        compiler_params=pltpu.CompilerParams(
            dimension_semantics=("parallel", "parallel"),
            vmem_limit_bytes=int(vmem_limit),
        ),
    )(xp, edges, w2, b_col)

    if pad_c or pad_l:
        out = out[:, :C, :L]
    return out


_SINGLE_BUFFER_OK = None  # whether pipeline_mode=pl.Buffered(1) lowers here


def resblock_pallas(x, w, b, *, l_tile_max=2048, use_bf16=True):
    """x: (B, C, L) f32, w: (C_out, C_in, 3) f32 (PyTorch OIW), b: (C_out,) f32."""
    global _SINGLE_BUFFER_OK
    if _SINGLE_BUFFER_OK is None:
        try:
            out = _resblock_impl(x, w, b, l_tile_max=l_tile_max,
                                 use_bf16=use_bf16,
                                 single_buffer_invariants=True)
            _SINGLE_BUFFER_OK = True
            return out
        except Exception:
            # pl.Buffered(1) / pipeline_mode unsupported on this toolchain:
            # fall back to default double-buffered invariant operands.
            _SINGLE_BUFFER_OK = False
    return _resblock_impl(x, w, b, l_tile_max=l_tile_max, use_bf16=use_bf16,
                          single_buffer_invariants=_SINGLE_BUFFER_OK)


def resblock_reference(x, w, b):
    """Pure-JAX reference matching PyTorch ResBlock semantics."""
    h = jnp.maximum(x, 0.0)
    y = jax.lax.conv_general_dilated(
        h, w, window_strides=(1,), padding=((1, 1),),
        dimension_numbers=("NCH", "OIH", "NCH"),
    ) + b.reshape(1, -1, 1)
    return x + 0.3 * y


if __name__ == "__main__":
    B, dim, L = 2, 4, 16

    key = jax.random.PRNGKey(0)
    kx, kw, kb = jax.random.split(key, 3)

    x = jax.random.normal(kx, (B, dim, L), dtype=jnp.float32)
    # deterministic init mimicking PyTorch Conv1d default (uniform +-1/sqrt(fan_in))
    bound = 1.0 / (dim * 3) ** 0.5
    w = jax.random.uniform(kw, (dim, dim, 3), minval=-bound, maxval=bound,
                           dtype=jnp.float32)
    b = jax.random.uniform(kb, (dim,), minval=-bound, maxval=bound,
                           dtype=jnp.float32)

    ref = resblock_reference(x, w, b)

    # bf16 MXU operands (default fast path): loose tolerance.
    out = jax.block_until_ready(resblock_pallas(x, w, b))
    assert out.shape == ref.shape
    assert jnp.allclose(out, ref, atol=5e-2, rtol=5e-2), "mismatch vs reference (bf16)"

    # f32 operand path: tight tolerance.
    out_f32 = jax.block_until_ready(resblock_pallas(x, w, b, use_bf16=False))
    assert jnp.allclose(out_f32, ref, atol=1e-3, rtol=1e-3), "mismatch vs reference (f32)"

    print("KERNEL_OK")
</pallas_src>

<mosaic_0001>
module attributes {stable_mosaic.version = 11 : i64} {
  func.func @resblock_kernel(%arg0: i32, %arg1: i32, %arg2: memref<1x16x128xf32, #tpu.memory_space<vmem>>, %arg3: memref<1x1x16x2xf32, #tpu.memory_space<vmem>>, %arg4: memref<16x48xbf16, #tpu.memory_space<vmem>>, %arg5: memref<16x1xf32, #tpu.memory_space<vmem>>, %arg6: memref<1x16x128xf32, #tpu.memory_space<vmem>>, %arg7: memref<48x128xbf16, #tpu.memory_space<vmem>>) attributes {dimension_semantics = [#tpu.dimension_semantics<parallel>, #tpu.dimension_semantics<parallel>], iteration_bounds = array<i64: 2, 1>, scalar_prefetch = 0 : i64, scratch_operands = 1 : i64, tpu.core_type = #tpu.core_type<tc>, window_params = [{transform_indices = @transform_0, window_bounds = array<i64: 1, 16, 128>}, {transform_indices = @transform_1, window_bounds = array<i64: 1, 1, 16, 2>}, {pipeline_mode = #tpu.pipeline_mode<synchronous>, transform_indices = @transform_2, window_bounds = array<i64: 16, 48>}, {pipeline_mode = #tpu.pipeline_mode<synchronous>, transform_indices = @transform_3, window_bounds = array<i64: 16, 1>}, {transform_indices = @transform_4, window_bounds = array<i64: 1, 16, 128>}]} {
    %c0 = arith.constant 0 : index
    %c0_0 = arith.constant 0 : index
    %c0_1 = arith.constant 0 : index
    %0 = vector.load %arg2[%c0, %c0_0, %c0_1] : memref<1x16x128xf32, #tpu.memory_space<vmem>>, vector<1x16x128xf32>
    %1 = vector.shape_cast %0 : vector<1x16x128xf32> to vector<16x128xf32>
    %cst = arith.constant 0.000000e+00 : f32
    %2 = vector.broadcast %cst : f32 to vector<16x128xf32>
    %3 = arith.maximumf %1, %2 : vector<16x128xf32>
    %c0_2 = arith.constant 0 : index
    %c0_3 = arith.constant 0 : index
    %c0_4 = arith.constant 0 : index
    %c0_5 = arith.constant 0 : index
    %4 = vector.load %arg3[%c0_2, %c0_3, %c0_4, %c0_5] : memref<1x1x16x2xf32, #tpu.memory_space<vmem>>, vector<1x1x16x2xf32>
    %5 = vector.shape_cast %4 : vector<1x1x16x2xf32> to vector<16x2xf32>
    %cst_6 = arith.constant 0.000000e+00 : f32
    %6 = vector.broadcast %cst_6 : f32 to vector<16x2xf32>
    %7 = arith.maximumf %5, %6 : vector<16x2xf32>
    %c1_i32 = arith.constant 1 : i32
    %8 = tpu.dynamic_rotate %3 by %c1_i32 dim 1 : vector<16x128xf32>, i32 -> vector<16x128xf32>
    %9 = arith.truncf %8 : vector<16x128xf32> to vector<16x128xbf16>
    %c0_7 = arith.constant 0 : index
    %c0_8 = arith.constant 0 : index
    %10 = vector.load %arg7[%c0_7, %c0_8] : memref<48x128xbf16, #tpu.memory_space<vmem>>, vector<16x128xbf16>
    tpu.vector_store %arg7[%c0_7, %c0_8], %9 {strides = array<i32>} : memref<48x128xbf16, #tpu.memory_space<vmem>>, vector<16x128xbf16>,
    %11 = vector.extract_strided_slice %7 {offsets = [0, 0], sizes = [16, 1], strides = [1, 1]} : vector<16x2xf32> to vector<16x1xf32>
    %12 = arith.truncf %11 : vector<16x1xf32> to vector<16x1xbf16>
    %c0_9 = arith.constant 0 : index
    %c0_10 = arith.constant 0 : index
    %13 = vector.load %arg7[%c0_9, %c0_10] : memref<48x128xbf16, #tpu.memory_space<vmem>>, vector<16x1xbf16>
    tpu.vector_store %arg7[%c0_9, %c0_10], %12 {strides = array<i32>} : memref<48x128xbf16, #tpu.memory_space<vmem>>, vector<16x1xbf16>,
    %14 = arith.truncf %3 : vector<16x128xf32> to vector<16x128xbf16>
    %c16 = arith.constant 16 : index
    %c0_11 = arith.constant 0 : index
    %15 = vector.load %arg7[%c16, %c0_11] : memref<48x128xbf16, #tpu.memory_space<vmem>>, vector<16x128xbf16>
    tpu.vector_store %arg7[%c16, %c0_11], %14 {strides = array<i32>} : memref<48x128xbf16, #tpu.memory_space<vmem>>, vector<16x128xbf16>,
    %c127_i32 = arith.constant 127 : i32
    %16 = tpu.dynamic_rotate %3 by %c127_i32 dim 1 : vector<16x128xf32>, i32 -> vector<16x128xf32>
    %17 = arith.truncf %16 : vector<16x128xf32> to vector<16x128xbf16>
    %c32 = arith.constant 32 : index
    %c0_12 = arith.constant 0 : index
    %18 = vector.load %arg7[%c32, %c0_12] : memref<48x128xbf16, #tpu.memory_space<vmem>>, vector<16x128xbf16>
    tpu.vector_store %arg7[%c32, %c0_12], %17 {strides = array<i32>} : memref<48x128xbf16, #tpu.memory_space<vmem>>, vector<16x128xbf16>,
    %19 = vector.extract_strided_slice %7 {offsets = [0, 1], sizes = [16, 1], strides = [1, 1]} : vector<16x2xf32> to vector<16x1xf32>
    %20 = arith.truncf %19 : vector<16x1xf32> to vector<16x1xbf16>
    %c32_13 = arith.constant 32 : index
    %c127 = arith.constant 127 : index
    %21 = vector.load %arg7[%c32_13, %c127] : memref<48x128xbf16, #tpu.memory_space<vmem>>, vector<16x1xbf16>
    tpu.vector_store %arg7[%c32_13, %c127], %20 {strides = array<i32>} : memref<48x128xbf16, #tpu.memory_space<vmem>>, vector<16x1xbf16>,
    %c0_14 = arith.constant 0 : index
    %c0_15 = arith.constant 0 : index
    %22 = vector.load %arg4[%c0_14, %c0_15] : memref<16x48xbf16, #tpu.memory_space<vmem>>, vector<16x48xbf16>
    %c0_16 = arith.constant 0 : index
    %c0_17 = arith.constant 0 : index
    %23 = vector.load %arg7[%c0_16, %c0_17] : memref<48x128xbf16, #tpu.memory_space<vmem>>, vector<48x128xbf16>
    %cst_18 = arith.constant dense<0.000000e+00> : vector<16x128xf32>
    %24 = tpu.matmul %22, %23, %cst_18 {dimension_numbers = #tpu.dot_dimension_numbers<[1], [0], [0], [1], [0, 0, 1, 1], [], []>} : vector<16x48xbf16>, vector<48x128xbf16>, vector<16x128xf32> -> vector<16x128xf32>
    %c0_19 = arith.constant 0 : index
    %c0_20 = arith.constant 0 : index
    %25 = vector.load %arg5[%c0_19, %c0_20] : memref<16x1xf32, #tpu.memory_space<vmem>>, vector<16x1xf32>
    %26 = vector.broadcast %25 : vector<16x1xf32> to vector<16x128xf32>
    %27 = arith.addf %24, %26 : vector<16x128xf32>
    %cst_21 = arith.constant 3.000000e-01 : f32
    %28 = vector.broadcast %cst_21 : f32 to vector<16x128xf32>
    %29 = arith.mulf %28, %27 : vector<16x128xf32>
    %30 = arith.addf %1, %29 : vector<16x128xf32>
    %c0_22 = arith.constant 0 : index
    %c0_23 = arith.constant 0 : index
    %c0_24 = arith.constant 0 : index
    %31 = vector.load %arg6[%c0_22, %c0_23, %c0_24] : memref<1x16x128xf32, #tpu.memory_space<vmem>>, vector<1x16x128xf32>
    %32 = vector.shape_cast %31 : vector<1x16x128xf32> to vector<16x128xf32>
    %33 = vector.shape_cast %30 : vector<16x128xf32> to vector<1x16x128xf32>
    tpu.vector_store %arg6[%c0_22, %c0_23, %c0_24], %33 {strides = array<i32>} : memref<1x16x128xf32, #tpu.memory_space<vmem>>, vector<1x16x128xf32>,
    return
  }
  func.func @transform_0(%arg0: i32, %arg1: i32) -> (i32, i32, i32) {
    %c0_i32 = arith.constant 0 : i32
    %c0_i32_0 = arith.constant 0 : i32
    return %arg0, %c0_i32, %arg1 : i32, i32, i32
  }
  func.func @transform_1(%arg0: i32, %arg1: i32) -> (i32, i32, i32, i32) {
    %c0_i32 = arith.constant 0 : i32
    %c0_i32_0 = arith.constant 0 : i32
    %c0_i32_1 = arith.constant 0 : i32
    return %arg0, %arg1, %c0_i32, %c0_i32_0 : i32, i32, i32, i32
  }
  func.func @transform_2(%arg0: i32, %arg1: i32) -> (i32, i32) {
    %c0_i32 = arith.constant 0 : i32
    %c0_i32_0 = arith.constant 0 : i32
    %c0_i32_1 = arith.constant 0 : i32
    return %c0_i32, %c0_i32_0 : i32, i32
  }
  func.func @transform_3(%arg0: i32, %arg1: i32) -> (i32, i32) {
    %c0_i32 = arith.constant 0 : i32
    %c0_i32_0 = arith.constant 0 : i32
    %c0_i32_1 = arith.constant 0 : i32
    return %c0_i32, %c0_i32_0 : i32, i32
  }
  func.func @transform_4(%arg0: i32, %arg1: i32) -> (i32, i32, i32) {
    %c0_i32 = arith.constant 0 : i32
    %c0_i32_0 = arith.constant 0 : i32
    return %arg0, %c0_i32, %arg1 : i32, i32, i32
  }
}

module attributes {stable_mosaic.version = 11 : i64} {
  func.func @resblock_kernel(%arg0: i32, %arg1: i32, %arg2: memref<1x16x128xf32, #tpu.memory_space<vmem>>, %arg3: memref<1x1x16x2xf32, #tpu.memory_space<vmem>>, %arg4: memref<16x48xbf16, #tpu.memory_space<vmem>>, %arg5: memref<16x1xf32, #tpu.memory_space<vmem>>, %arg6: memref<1x16x128xf32, #tpu.memory_space<vmem>>, %arg7: memref<48x128xbf16, #tpu.memory_space<vmem>>) attributes {dimension_semantics = [#tpu.dimension_semantics<parallel>, #tpu.dimension_semantics<parallel>], iteration_bounds = array<i64: 2, 1>, scalar_prefetch = 0 : i64, scratch_operands = 1 : i64, tpu.core_type = #tpu.core_type<tc>, window_params = [{transform_indices = @transform_0, window_bounds = array<i64: 1, 16, 128>}, {transform_indices = @transform_1, window_bounds = array<i64: 1, 1, 16, 2>}, {pipeline_mode = #tpu.pipeline_mode<synchronous>, transform_indices = @transform_2, window_bounds = array<i64: 16, 48>}, {pipeline_mode = #tpu.pipeline_mode<synchronous>, transform_indices = @transform_3, window_bounds = array<i64: 16, 1>}, {transform_indices = @transform_4, window_bounds = array<i64: 1, 16, 128>}]} {
    %c0 = arith.constant 0 : index
    %c0_0 = arith.constant 0 : index
    %c0_1 = arith.constant 0 : index
    %0 = vector.load %arg2[%c0, %c0_0, %c0_1] : memref<1x16x128xf32, #tpu.memory_space<vmem>>, vector<1x16x128xf32>
    %1 = vector.shape_cast %0 : vector<1x16x128xf32> to vector<16x128xf32>
    %cst = arith.constant 0.000000e+00 : f32
    %2 = vector.broadcast %cst : f32 to vector<16x128xf32>
    %3 = arith.maximumf %1, %2 : vector<16x128xf32>
    %c0_2 = arith.constant 0 : index
    %c0_3 = arith.constant 0 : index
    %c0_4 = arith.constant 0 : index
    %c0_5 = arith.constant 0 : index
    %4 = vector.load %arg3[%c0_2, %c0_3, %c0_4, %c0_5] : memref<1x1x16x2xf32, #tpu.memory_space<vmem>>, vector<1x1x16x2xf32>
    %5 = vector.shape_cast %4 : vector<1x1x16x2xf32> to vector<16x2xf32>
    %cst_6 = arith.constant 0.000000e+00 : f32
    %6 = vector.broadcast %cst_6 : f32 to vector<16x2xf32>
    %7 = arith.maximumf %5, %6 : vector<16x2xf32>
    %c1_i32 = arith.constant 1 : i32
    %8 = tpu.dynamic_rotate %3 by %c1_i32 dim 1 : vector<16x128xf32>, i32 -> vector<16x128xf32>
    %9 = arith.truncf %8 : vector<16x128xf32> to vector<16x128xbf16>
    %c0_7 = arith.constant 0 : index
    %c0_8 = arith.constant 0 : index
    %10 = vector.load %arg7[%c0_7, %c0_8] : memref<48x128xbf16, #tpu.memory_space<vmem>>, vector<16x128xbf16>
    tpu.vector_store %arg7[%c0_7, %c0_8], %9 {strides = array<i32>} : memref<48x128xbf16, #tpu.memory_space<vmem>>, vector<16x128xbf16>,
    %11 = vector.extract_strided_slice %7 {offsets = [0, 0], sizes = [16, 1], strides = [1, 1]} : vector<16x2xf32> to vector<16x1xf32>
    %12 = arith.truncf %11 : vector<16x1xf32> to vector<16x1xbf16>
    %c0_9 = arith.constant 0 : index
    %c0_10 = arith.constant 0 : index
    %13 = vector.load %arg7[%c0_9, %c0_10] : memref<48x128xbf16, #tpu.memory_space<vmem>>, vector<16x1xbf16>
    tpu.vector_store %arg7[%c0_9, %c0_10], %12 {strides = array<i32>} : memref<48x128xbf16, #tpu.memory_space<vmem>>, vector<16x1xbf16>,
    %14 = arith.truncf %3 : vector<16x128xf32> to vector<16x128xbf16>
    %c16 = arith.constant 16 : index
    %c0_11 = arith.constant 0 : index
    %15 = vector.load %arg7[%c16, %c0_11] : memref<48x128xbf16, #tpu.memory_space<vmem>>, vector<16x128xbf16>
    tpu.vector_store %arg7[%c16, %c0_11], %14 {strides = array<i32>} : memref<48x128xbf16, #tpu.memory_space<vmem>>, vector<16x128xbf16>,
    %c127_i32 = arith.constant 127 : i32
    %16 = tpu.dynamic_rotate %3 by %c127_i32 dim 1 : vector<16x128xf32>, i32 -> vector<16x128xf32>
    %17 = arith.truncf %16 : vector<16x128xf32> to vector<16x128xbf16>
    %c32 = arith.constant 32 : index
    %c0_12 = arith.constant 0 : index
    %18 = vector.load %arg7[%c32, %c0_12] : memref<48x128xbf16, #tpu.memory_space<vmem>>, vector<16x128xbf16>
    tpu.vector_store %arg7[%c32, %c0_12], %17 {strides = array<i32>} : memref<48x128xbf16, #tpu.memory_space<vmem>>, vector<16x128xbf16>,
    %19 = vector.extract_strided_slice %7 {offsets = [0, 1], sizes = [16, 1], strides = [1, 1]} : vector<16x2xf32> to vector<16x1xf32>
    %20 = arith.truncf %19 : vector<16x1xf32> to vector<16x1xbf16>
    %c32_13 = arith.constant 32 : index
    %c127 = arith.constant 127 : index
    %21 = vector.load %arg7[%c32_13, %c127] : memref<48x128xbf16, #tpu.memory_space<vmem>>, vector<16x1xbf16>
    tpu.vector_store %arg7[%c32_13, %c127], %20 {strides = array<i32>} : memref<48x128xbf16, #tpu.memory_space<vmem>>, vector<16x1xbf16>,
    %c0_14 = arith.constant 0 : index
    %c0_15 = arith.constant 0 : index
    %22 = vector.load %arg4[%c0_14, %c0_15] : memref<16x48xbf16, #tpu.memory_space<vmem>>, vector<16x48xbf16>
    %c0_16 = arith.constant 0 : index
    %c0_17 = arith.constant 0 : index
    %23 = vector.load %arg7[%c0_16, %c0_17] : memref<48x128xbf16, #tpu.memory_space<vmem>>, vector<48x128xbf16>
    %cst_18 = arith.constant dense<0.000000e+00> : vector<16x128xf32>
    %24 = tpu.matmul %22, %23, %cst_18 {dimension_numbers = #tpu.dot_dimension_numbers<[1], [0], [0], [1], [0, 0, 1, 1], [], []>} : vector<16x48xbf16>, vector<48x128xbf16>, vector<16x128xf32> -> vector<16x128xf32>
    %c0_19 = arith.constant 0 : index
    %c0_20 = arith.constant 0 : index
    %25 = vector.load %arg5[%c0_19, %c0_20] : memref<16x1xf32, #tpu.memory_space<vmem>>, vector<16x1xf32>
    %26 = vector.broadcast %25 : vector<16x1xf32> to vector<16x128xf32>
    %27 = arith.addf %24, %26 : vector<16x128xf32>
    %cst_21 = arith.constant 3.000000e-01 : f32
    %28 = vector.broadcast %cst_21 : f32 to vector<16x128xf32>
    %29 = arith.mulf %28, %27 : vector<16x128xf32>
    %30 = arith.addf %1, %29 : vector<16x128xf32>
    %c0_22 = arith.constant 0 : index
    %c0_23 = arith.constant 0 : index
    %c0_24 = arith.constant 0 : index
    %31 = vector.load %arg6[%c0_22, %c0_23, %c0_24] : memref<1x16x128xf32, #tpu.memory_space<vmem>>, vector<1x16x128xf32>
    %32 = vector.shape_cast %31 : vector<1x16x128xf32> to vector<16x128xf32>
    %33 = vector.shape_cast %30 : vector<16x128xf32> to vector<1x16x128xf32>
    tpu.vector_store %arg6[%c0_22, %c0_23, %c0_24], %33 {strides = array<i32>} : memref<1x16x128xf32, #tpu.memory_space<vmem>>, vector<1x16x128xf32>,
    return
  }
  func.func @transform_0(%arg0: i32, %arg1: i32) -> (i32, i32, i32) {
    %c0_i32 = arith.constant 0 : i32
    %c0_i32_0 = arith.constant 0 : i32
    return %arg0, %c0_i32, %arg1 : i32, i32, i32
  }
  func.func @transform_1(%arg0: i32, %arg1: i32) -> (i32, i32, i32, i32) {
    %c0_i32 = arith.constant 0 : i32
    %c0_i32_0 = arith.constant 0 : i32
    %c0_i32_1 = arith.constant 0 : i32
    return %arg0, %arg1, %c0_i32, %c0_i32_0 : i32, i32, i32, i32
  }
  func.func @transform_2(%arg0: i32, %arg1: i32) -> (i32, i32) {
    %c0_i32 = arith.constant 0 : i32
    %c0_i32_0 = arith.constant 0 : i32
    %c0_i32_1 = arith.constant 0 : i32
    return %c0_i32, %c0_i32_0 : i32, i32
  }
  func.func @transform_3(%arg0: i32, %arg1: i32) -> (i32, i32) {
    %c0_i32 = arith.constant 0 : i32
    %c0_i32_0 = arith.constant 0 : i32
    %c0_i32_1 = arith.constant 0 : i32
    return %c0_i32, %c0_i32_0 : i32, i32
  }
  func.func @transform_4(%arg0: i32, %arg1: i32) -> (i32, i32, i32) {
    %c0_i32 = arith.constant 0 : i32
    %c0_i32_0 = arith.constant 0 : i32
    return %arg0, %c0_i32, %arg1 : i32, i32, i32
  }
}

</mosaic_0001>

<llo_original>
// kernel: _resblock_impl.1
$region0: #{_resblock_impl.1}
  #allocation0 [shape = 'u32[]', space=smem, size = 0x4, offset = 0x4, fixed_abs, tag = 'smem constant byte address 0x4 - core index']
  #allocation1 [shape = 'u32[144,128]{1,0:T(1,128)}', space=vmem, size = 0x12000, scoped, tag = 'internal scratch']
  #allocation2 [shape = 'bf16[48,128]{1,0:T(16,128)(2,1)}', space=vmem, size = 0x3000, scoped, tag = 'scratch operand']
  %s0 = inlined_call_operand.vmem [shape: f32[2,16,128], index: 0, kind: input, shape index: {}]
  %s1 = inlined_call_operand.vmem [shape: f32[2,1,16,2], index: 1, kind: input, shape index: {}]
  %s2 = inlined_call_operand.vmem [shape: bf16[16,48], index: 2, kind: input, shape index: {}]
  %s3 = inlined_call_operand.vmem [shape: f32[16,1], index: 3, kind: input, shape index: {}]
  %s4 = inlined_call_operand.vmem [shape: f32[2,16,128], index: 4, kind: output, shape index: {}]
  %s5 = sld [smem:[#allocation0]]
  $region49: #{_resblock_impl.1} parent=0
    _
  %s7 = ssub.s32 1, %s5
  %s8 = scalar_select 0, %s7, %s5
  loop: start=0, step=1, limit=4
  $region2: #{_resblock_impl.1} parent=0 // loop_pre_header
    _
  $region3: #{_resblock_impl.1} parent=0 // loop_header
    %s10 = sphi 0, %s14
    %p11 = scmp.ge.s32.totalorder %s10, 4
    %s17 = sphi 0, %s29
    %s18 = sphi 0, %s25
    %s19 = sphi 0, %s17
    %s20 = sphi 0, %s18
    %s21 = sphi 0, %s19
    %s22 = sphi 0, %s20
    %s34 = sphi 0, %s36
    %s37 = sphi 0, %s34
    %s38 = sphi 0, %s37
    %s54 = sphi 0, %s38
    %s62 = sphi 0, %s64
    %s65 = sphi 0, %s62
    %s66 = sphi 0, %s65
    %s82 = sphi 0, %s66
    %s86 = sphi 0, %s86
    %s88 = sphi 0, %s86
    %s89 = sphi 0, %s88
    %s103 = sphi 0, %s89
    %s107 = sphi 0, %s107
    %s109 = sphi 0, %s107
    %s110 = sphi 0, %s109
    %s124 = sphi 0, %s110
    %s132 = sphi 0, %s134
    %s135 = sphi 0, %s132
    %s136 = sphi 0, %s135
    %s152 = sphi 0, %s136
  $region4: #{_resblock_impl.1} parent=0 // loop_header_branch
    %13 = sbr.rel (%p11) target = $region8
  $region5: #{_resblock_impl.1} parent=0 // loop_body
    %s15 = ssub.s32 %s10, 1
    %s16 = ssub.s32 %s10, 2
    %s23 = sadd.s32 1, %s18
    %p24 = scmp.ge.s32.totalorder %s23, 1
    %s25 = scalar_select %p24, 0, %s23
    %s26 = sadd.s32 1, %s17
    %s27 = scalar_select %p24, %s26, %s17
    %p28 = scmp.ge.s32.totalorder %s27, 2
    %s29 = scalar_select %p28, 0, %s27
    %s30 = ssub.s32 %s17, %s29
    %s31 = ssub.s32 %s18, %s25
    %s32 = sor.u32 %s30, %s31
    %p33 = scmp.eq.s32.totalorder %s32, 0
    %s35 = sadd.s32 %s34, 1
    %s36 = scalar_select %p33, %s34, %s35
    %p39 = pneg %p33
    %p40 = scmp.eq.s32.totalorder %s10, 1
    %p41 = por %p39, %p40
    %p42 = scmp.ne.s32.totalorder %s34, %s37
    %p43 = scmp.eq.s32.totalorder %s10, 0
    %p44 = por %p42, %p43
    %p45 = scmp.ne.s32.totalorder %s34, %s37
    %p46 = scmp.eq.s32.totalorder %s15, 1
    %p47 = por %p45, %p46
    %p48 = scmp.ne.s32.totalorder %s37, %s38
    %p49 = scmp.eq.s32.totalorder %s15, 0
    %p50 = por %p48, %p49
    %p51 = scmp.ne.s32.totalorder %s37, %s38
    %p52 = scmp.eq.s32.totalorder %s16, 1
    %p53 = por %p51, %p52
    %p55 = scmp.ne.s32.totalorder %s38, %s54
    %p56 = scmp.eq.s32.totalorder %s16, 0
    %p57 = por %p55, %p56
    %s58 = ssub.s32 %s17, %s29
    %s59 = ssub.s32 %s18, %s25
    %s60 = sor.u32 %s58, %s59
    %p61 = scmp.eq.s32.totalorder %s60, 0
    %s63 = sadd.s32 %s62, 1
    %s64 = scalar_select %p61, %s62, %s63
    %p67 = pneg %p61
    %p68 = scmp.eq.s32.totalorder %s10, 1
    %p69 = por %p67, %p68
    %p70 = scmp.ne.s32.totalorder %s62, %s65
    %p71 = scmp.eq.s32.totalorder %s10, 0
    %p72 = por %p70, %p71
    %p73 = scmp.ne.s32.totalorder %s62, %s65
    %p74 = scmp.eq.s32.totalorder %s15, 1
    %p75 = por %p73, %p74
    %p76 = scmp.ne.s32.totalorder %s65, %s66
    %p77 = scmp.eq.s32.totalorder %s15, 0
    %p78 = por %p76, %p77
    %p79 = scmp.ne.s32.totalorder %s65, %s66
    %p80 = scmp.eq.s32.totalorder %s16, 1
    %p81 = por %p79, %p80
    %p83 = scmp.ne.s32.totalorder %s66, %s82
    %p84 = scmp.eq.s32.totalorder %s16, 0
    %p85 = por %p83, %p84
    %s87 = sadd.s32 %s86, 1
    %p90 = scmp.eq.s32.totalorder %s10, 1
    %p91 = scmp.ne.s32.totalorder %s86, %s88
    %p92 = scmp.eq.s32.totalorder %s10, 0
    %p93 = por %p91, %p92
    %p94 = scmp.ne.s32.totalorder %s86, %s88
    %p95 = scmp.eq.s32.totalorder %s15, 1
    %p96 = por %p94, %p95
    %p97 = scmp.ne.s32.totalorder %s88, %s89
    %p98 = scmp.eq.s32.totalorder %s15, 0
    %p99 = por %p97, %p98
    %p100 = scmp.ne.s32.totalorder %s88, %s89
    %p101 = scmp.eq.s32.totalorder %s16, 1
    %p102 = por %p100, %p101
    %p104 = scmp.ne.s32.totalorder %s89, %s103
    %p105 = scmp.eq.s32.totalorder %s16, 0
    %p106 = por %p104, %p105
    %s108 = sadd.s32 %s107, 1
    %p111 = scmp.eq.s32.totalorder %s10, 1
    %p112 = scmp.ne.s32.totalorder %s107, %s109
    %p113 = scmp.eq.s32.totalorder %s10, 0
    %p114 = por %p112, %p113
    %p115 = scmp.ne.s32.totalorder %s107, %s109
    %p116 = scmp.eq.s32.totalorder %s15, 1
    %p117 = por %p115, %p116
    %p118 = scmp.ne.s32.totalorder %s109, %s110
    %p119 = scmp.eq.s32.totalorder %s15, 0
    %p120 = por %p118, %p119
    %p121 = scmp.ne.s32.totalorder %s109, %s110
    %p122 = scmp.eq.s32.totalorder %s16, 1
    %p123 = por %p121, %p122
    %p125 = scmp.ne.s32.totalorder %s110, %s124
    %p126 = scmp.eq.s32.totalorder %s16, 0
    %p127 = por %p125, %p126
    %s128 = ssub.s32 %s17, %s29
    %s129 = ssub.s32 %s18, %s25
    %s130 = sor.u32 %s128, %s129
    %p131 = scmp.eq.s32.totalorder %s130, 0
    %s133 = sadd.s32 %s132, 1
    %s134 = scalar_select %p131, %s132, %s133
    %p137 = pneg %p131
    %p138 = scmp.eq.s32.totalorder %s10, 1
    %p139 = por %p137, %p138
    %p140 = scmp.ne.s32.totalorder %s132, %s135
    %p141 = scmp.eq.s32.totalorder %s10, 0
    %p142 = por %p140, %p141
    %p143 = scmp.ne.s32.totalorder %s132, %s135
    %p144 = scmp.eq.s32.totalorder %s15, 1
    %p145 = por %p143, %p144
    %p146 = scmp.ne.s32.totalorder %s135, %s136
    %p147 = scmp.eq.s32.totalorder %s15, 0
    %p148 = por %p146, %p147
    %p149 = scmp.ne.s32.totalorder %s135, %s136
    %p150 = scmp.eq.s32.totalorder %s16, 1
    %p151 = por %p149, %p150
    %p153 = scmp.ne.s32.totalorder %s136, %s152
    %p154 = scmp.eq.s32.totalorder %s16, 0
    %p155 = por %p153, %p154
    %p156 = scmp.le.s32.totalorder 1, %s10
    %p157 = scmp.lt.s32.totalorder %s10, 3
    %p158 = pnand %p156, %p157
    %p159 = pneg %p158
    // Predicated region
    $region9: #{_resblock_impl.1} parent=5 // pred_check
      _
    $region10: #{_resblock_impl.1} parent=5 // pred_check_branch
      %161 = sbr.rel (%p158) target = $region12
    $region11: #{_resblock_impl.1} parent=5 // pred_region
      %s162 = ssub.s32 %s10, 1
      // Predicated region
      $region13: #{_resblock_impl.1} parent=11 // pred_check
        %p163 = pneg %p99
      $region14: #{_resblock_impl.1} parent=11 // pred_check_branch
        %165 = sbr.rel (%p163) target = $region16
      $region15: #{_resblock_impl.1} parent=11 // pred_region
        _
      $region16: #{_resblock_impl.1} parent=11 // pred_fallthru
        _
      // Predicated region
      $region17: #{_resblock_impl.1} parent=11 // pred_check
        %p166 = pneg %p120
      $region18: #{_resblock_impl.1} parent=11 // pred_check_branch
        %168 = sbr.rel (%p166) target = $region20
      $region19: #{_resblock_impl.1} parent=11 // pred_region
        _
      $region20: #{_resblock_impl.1} parent=11 // pred_fallthru
        _
    $region12: #{_resblock_impl.1} parent=5 // pred_fallthru
      _
    %p169 = scmp.lt.s32.totalorder %s10, 2
    // Predicated region
    $region21: #{_resblock_impl.1} parent=5 // pred_check
      %p170 = pneg %p169
    $region22: #{_resblock_impl.1} parent=5 // pred_check_branch
      %172 = sbr.rel (%p170) target = $region24
    $region23: #{_resblock_impl.1} parent=5 // pred_region
      // Predicated region
      $region25: #{_resblock_impl.1} parent=23 // pred_check
        %p173 = pneg %p44
      $region26: #{_resblock_impl.1} parent=23 // pred_check_branch
        %175 = sbr.rel (%p173) target = $region28
      $region27: #{_resblock_impl.1} parent=23 // pred_region
        %p176 = scmp.lt.s32.totalorder %s17, 1
        %s177 = scalar_select %p176, %s17, 1
        %p178 = scmp.lt.s32.totalorder %s18, 0
        %s179 = scalar_select %p178, %s18, 0
        %s180 = smul.addr %s177, 2
        %s181 = sadd.s32 %s179, %s180
        %s182 = smul.addr %s181, 8
        %s183 = scalar_lea.vmem %s0, %s182
      $region28: #{_resblock_impl.1} parent=23 // pred_fallthru
        _
      // Predicated region
      $region29: #{_resblock_impl.1} parent=23 // pred_check
        %p184 = pneg %p72
      $region30: #{_resblock_impl.1} parent=23 // pred_check_branch
        %186 = sbr.rel (%p184) target = $region32
      $region31: #{_resblock_impl.1} parent=23 // pred_region
        %p187 = scmp.lt.s32.totalorder %s17, 1
        %s188 = scalar_select %p187, %s17, 1
        %p189 = scmp.lt.s32.totalorder %s18, 0
        %s190 = scalar_select %p189, %s18, 0
        %s191 = smul.addr %s190, 2
        %s192 = smul.addr %s188, 2
        %s193 = sadd.s32 %s191, %s192
        %s194 = smul.addr %s193, 8
        %s195 = scalar_lea.vmem %s1, %s194
      $region32: #{_resblock_impl.1} parent=23 // pred_fallthru
        _
    $region24: #{_resblock_impl.1} parent=5 // pred_fallthru
      _
    %p196 = scmp.le.s32.totalorder 1, %s10
    %p197 = scmp.lt.s32.totalorder %s10, 3
    %p198 = pnand %p196, %p197
    %p199 = pneg %p198
    // Predicated region
    $region33: #{_resblock_impl.1} parent=5 // pred_check
      _
    $region34: #{_resblock_impl.1} parent=5 // pred_check_branch
      %201 = sbr.rel (%p198) target = $region36
    $region35: #{_resblock_impl.1} parent=5 // pred_region
      %s202 = ssub.s32 %s10, 1
      %p203 = scmp.lt.s32.totalorder %s19, 1
      %s204 = scalar_select %p203, %s19, 1
      %p205 = scmp.lt.s32.totalorder %s20, 0
      %s206 = scalar_select %p205, %s20, 0
      %s207 = smul.addr %s204, 2
      %s208 = sadd.s32 %s206, %s207
      %s209 = smul.addr %s208, 8
      %s210 = scalar_lea.vmem %s0, %s209
      %p211 = pneg %p50
      %p212 = pneg %p47
      %p213 = scmp.lt.s32.totalorder %s19, 1
      %s214 = scalar_select %p213, %s19, 1
      %p215 = scmp.lt.s32.totalorder %s20, 0
      %s216 = scalar_select %p215, %s20, 0
      %s217 = smul.addr %s216, 2
      %s218 = smul.addr %s214, 2
      %s219 = sadd.s32 %s217, %s218
      %s220 = smul.addr %s219, 8
      %s221 = scalar_lea.vmem %s1, %s220
      %p222 = pneg %p78
      %p223 = pneg %p75
      %p224 = pneg %p99
      %p225 = pneg %p96
      %p226 = pneg %p120
      %p227 = pneg %p117
      %p228 = pneg %p148
      %p229 = pneg %p145
      %p230 = scmp.lt.s32.totalorder %s19, 1
      %s231 = scalar_select %p230, %s19, 1
      %p232 = scmp.lt.s32.totalorder %s20, 0
      %s233 = scalar_select %p232, %s20, 0
      %s234 = smul.addr %s231, 2
      %s235 = sadd.s32 %s233, %s234
      %s236 = smul.addr %s235, 8
      %s237 = scalar_lea.vmem %s4, %s236
      %p238 = scmp.lt.s32.totalorder %s19, 1
      %s239 = scalar_select %p238, %s19, 1
      %p240 = scmp.lt.s32.totalorder %s20, 0
      %s241 = scalar_select %p240, %s20, 0
      %s242 = smul.addr %s239, 2
      %s243 = sadd.s32 %s241, %s242
      %s244 = smul.addr %s243, 8
      %s245 = scalar_lea.vmem %s0, %s244
      %p246 = scmp.lt.s32.totalorder %s19, 1
      %s247 = scalar_select %p246, %s19, 1
      %p248 = scmp.lt.s32.totalorder %s20, 0
      %s249 = scalar_select %p248, %s20, 0
      %s250 = smul.addr %s249, 2
      %s251 = smul.addr %s247, 2
      %s252 = sadd.s32 %s250, %s251
      %s253 = smul.addr %s252, 8
      %s254 = scalar_lea.vmem %s1, %s253
      %p255 = scmp.lt.s32.totalorder %s19, 1
      %s256 = scalar_select %p255, %s19, 1
      %p257 = scmp.lt.s32.totalorder %s20, 0
      %s258 = scalar_select %p257, %s20, 0
      %s259 = smul.addr %s256, 2
      %s260 = sadd.s32 %s258, %s259
      %s261 = smul.addr %s260, 8
      %s262 = scalar_lea.vmem %s4, %s261
      %v264 = vld [vmem:[%s245] sm:$0xff]
      %v265 = vld [vmem:[%s245 + $0x8] sm:$0xff]
      %v266 = vmax.f32 %v264, 0.0
      %v267 = vmax.f32 %v265, 0.0
      %v268 = vld [vmem:[%s254] sm:$0xff]
      %v269 = vld [vmem:[%s254 + $0x8] sm:$0xff]
      %v270 = vmax.f32 %v268, 0.0
      %v271 = vmax.f32 %v269, 0.0
      %272 = vrot.lane.b32.xlu0 %v266, 1
      %v273 = vpop.permute.xlu0 %272
      %274 = vrot.lane.b32.xlu0 %v267, 1
      %v275 = vpop.permute.xlu0 %274
      %v276 = vpack.c.bf16 %v275, %v273
      %277 = vst [vmem:[#allocation2] sm:$0xff] %v276
      %v278 = vpack.c.bf16 %v271, %v270
      %vm279 = vcmask 7168
      %280 = vst.msk [vmem:[#allocation2] sm:$0xff] %vm279, %v278
      %v281 = vpack.c.bf16 %v267, %v266
      %282 = vst [vmem:[#allocation2 + $0x8] sm:$0xff] %v281
      %283 = vrot.lane.b32.xlu0 %v266, 127
      %v284 = vpop.permute.xlu0 %283
      %285 = vrot.lane.b32.xlu0 %v267, 127
      %v286 = vpop.permute.xlu0 %285
      %v287 = vpack.c.bf16 %v286, %v284
      %288 = vst [vmem:[#allocation2 + $0x10] sm:$0xff] %v287
      %290 = vrot.lane.b32.xlu0 %v278, 126
      %v291 = vpop.permute.xlu0 %290
      %vm293 = vcmask 1048568
      %294 = vst.msk [vmem:[#allocation2 + $0x10] sm:$0xff] %vm293, %v291
      %v295 = vld [vmem:[%s2] sm:$0xf]
      %v296 = vld [vmem:[%s2 + $0x4] sm:$0xf]
      %v297 = vld [vmem:[#allocation2] sm:$0xff]
      %v298 = vld [vmem:[#allocation2 + $0x8] sm:$0xff]
      %v299 = vld [vmem:[#allocation2 + $0x10] sm:$0xff]
      %v300 = vld [vmem:[%s3] sm:$0xff]
      %v301 = vld [vmem:[%s3 + $0x8] sm:$0xff]
      %303 = vset.pattern.permute.xlu0 0
      %304 = vperm.xlu0 %303, %v300
      %v305 = vpop.permute.xlu0 %304
      %308 = vset.pattern.permute.xlu0 0
      %309 = vperm.xlu0 %308, %v301
      %v310 = vpop.permute.xlu0 %309
      %v314 = vunpack.c.l.b16 %v295
      %v315 = vunpack.c.l.b16 %v296
      %v316 = vpack.c.b16 %v315, %v314
      %vm317 = vcmask 392192
      %v319 = vsel %vm317, %v316, 0
      %321 = vmatprep.subr.bf16.mxu0 0
      %322 = vmatpush1.bf16.msra.mxu0 %v297
      %323 = vmatprep.subr.bf16.mxu0 0
      %324 = vmatpush1.bf16.msra.mxu0 %v298
      %325 = vmatprep.subr.bf16.mxu0 0
      %326 = vmatpush1.bf16.msra.mxu0 %v299
      %327 = vmatprep.subr.bf16.mxu0 0
      %328 = vmatpush1.bf16.msra.mxu0 0
      %329 = vmatprep.subr.bf16.mxu0 0
      %330 = vmatpush1.bf16.msra.mxu0 0
      %331 = vmatprep.subr.bf16.mxu0 0
      %332 = vmatpush1.bf16.msra.mxu0 0
      %333 = vmatprep.subr.bf16.mxu0 0
      %334 = vmatpush1.bf16.msra.mxu0 0
      %335 = vmatprep.subr.bf16.mxu0 0
      %336 = vmatpush1.bf16.msra.mxu0 0
      %337 = vmatprep.subr.bf16.mxu0 0
      %338 = vmatpush1.bf16.msra.mxu0 0
      %339 = vmatprep.subr.bf16.mxu0 0
      %340 = vmatpush1.bf16.msra.mxu0 0
      %341 = vmatprep.subr.bf16.mxu0 0
      %342 = vmatpush1.bf16.msra.mxu0 0
      %343 = vmatprep.subr.bf16.mxu0 0
      %344 = vmatpush1.bf16.msra.mxu0 0
      %345 = vmatprep.subr.bf16.mxu0 0
      %346 = vmatpush1.bf16.msra.mxu0 0
      %347 = vmatprep.subr.bf16.mxu0 0
      %348 = vmatpush1.bf16.msra.mxu0 0
      %349 = vmatprep.subr.bf16.mxu0 0
      %350 = vmatpush1.bf16.msra.mxu0 0
      %351 = vmatprep.subr.bf16.mxu0 0
      %352 = vmatpush1.bf16.msra.mxu0 0
      %353 = vmatprep.mubr.bf16.mxu0 0
      %354 = vmatmul.mubr.bf16.gmra.mrb[0].mxu0 %v319
      %v355 = vpop.f32.mrb[0].mxu0
      %v356 = vadd.f32 %v305, %v355
      %v357 = vpop.f32.mrb[0].mxu0
      %v358 = vpop.f32.mrb[0].mxu0
      %v359 = vadd.f32 %v310, %v358
      %v360 = vpop.f32.mrb[0].mxu0
      %361 = vdwg.mxu0
      %v362 = vmul.f32 %v356, 0.3
      %v363 = vmul.f32 %v359, 0.3
      %v364 = vadd.f32 %v264, %v362
      %v365 = vadd.f32 %v265, %v363
      %366 = vst [vmem:[%s262] sm:$0xff] %v364
      %367 = vst [vmem:[%s262 + $0x8] sm:$0xff] %v365
      %p368 = scmp.lt.s32.totalorder %s19, 1
      %s369 = scalar_select %p368, %s19, 1
      %p370 = scmp.lt.s32.totalorder %s20, 0
      %s371 = scalar_select %p370, %s20, 0
      %s372 = smul.addr %s369, 2
      %s373 = sadd.s32 %s371, %s372
      %s374 = smul.addr %s373, 8
      %s375 = scalar_lea.vmem %s4, %s374
      // Predicated region
      $region37: #{_resblock_impl.1} parent=35 // pred_check
        %p376 = pneg %p145
      $region38: #{_resblock_impl.1} parent=35 // pred_check_branch
        %378 = sbr.rel (%p376) target = $region40
      $region39: #{_resblock_impl.1} parent=35 // pred_region
        _
      $region40: #{_resblock_impl.1} parent=35 // pred_fallthru
        _
    $region36: #{_resblock_impl.1} parent=5 // pred_fallthru
      _
    %p379 = scmp.le.s32.totalorder 2, %s10
    // Predicated region
    $region41: #{_resblock_impl.1} parent=5 // pred_check
      %p380 = pneg %p379
    $region42: #{_resblock_impl.1} parent=5 // pred_check_branch
      %382 = sbr.rel (%p380) target = $region44
    $region43: #{_resblock_impl.1} parent=5 // pred_region
      %s383 = ssub.s32 %s10, 2
      // Predicated region
      $region45: #{_resblock_impl.1} parent=43 // pred_check
        %p384 = pneg %p151
      $region46: #{_resblock_impl.1} parent=43 // pred_check_branch
        %386 = sbr.rel (%p384) target = $region48
      $region47: #{_resblock_impl.1} parent=43 // pred_region
        %p387 = scmp.lt.s32.totalorder %s21, 1
        %s388 = scalar_select %p387, %s21, 1
        %p389 = scmp.lt.s32.totalorder %s22, 0
        %s390 = scalar_select %p389, %s22, 0
        %s391 = smul.addr %s388, 2
        %s392 = sadd.s32 %s390, %s391
        %s393 = smul.addr %s392, 8
        %s394 = scalar_lea.vmem %s4, %s393
      $region48: #{_resblock_impl.1} parent=43 // pred_fallthru
        _
    $region44: #{_resblock_impl.1} parent=5 // pred_fallthru
      _
  $region6: #{_resblock_impl.1} parent=0 // loop_footer
    %s14 = sadd.s32 1, %s10
  $region7: #{_resblock_impl.1} parent=0 // loop_footer_branch
    %9 = sbr.rel target = $region3
  $region8: #{_resblock_impl.1} parent=0 // loop_exit
    _

// kernel: _resblock_impl.1
$region0: #{_resblock_impl.1}
  #allocation0 [shape = 'u32[]', space=smem, size = 0x4, offset = 0x4, fixed_abs, tag = 'smem constant byte address 0x4 - core index']
  #allocation1 [shape = 'u32[144,128]{1,0:T(1,128)}', space=vmem, size = 0x12000, scoped, tag = 'internal scratch']
  #allocation2 [shape = 'bf16[48,128]{1,0:T(16,128)(2,1)}', space=vmem, size = 0x3000, scoped, tag = 'scratch operand']
  %s0 = inlined_call_operand.vmem [shape: f32[2,16,128], index: 0, kind: input, shape index: {}]
  %s1 = inlined_call_operand.vmem [shape: f32[2,1,16,2], index: 1, kind: input, shape index: {}]
  %s2 = inlined_call_operand.vmem [shape: bf16[16,48], index: 2, kind: input, shape index: {}]
  %s3 = inlined_call_operand.vmem [shape: f32[16,1], index: 3, kind: input, shape index: {}]
  %s4 = inlined_call_operand.vmem [shape: f32[2,16,128], index: 4, kind: output, shape index: {}]
  %s5 = sld [smem:[#allocation0]]
  $region49: #{_resblock_impl.1} parent=0
    _
  %s7 = ssub.s32 1, %s5
  %s8 = scalar_select 0, %s7, %s5
  loop: start=0, step=1, limit=4
  $region2: #{_resblock_impl.1} parent=0 // loop_pre_header
    _
  $region3: #{_resblock_impl.1} parent=0 // loop_header
    %s10 = sphi 0, %s14
    %p11 = scmp.ge.s32.totalorder %s10, 4
    %s17 = sphi 0, %s29
    %s18 = sphi 0, %s25
    %s19 = sphi 0, %s17
    %s20 = sphi 0, %s18
    %s21 = sphi 0, %s19
    %s22 = sphi 0, %s20
    %s34 = sphi 0, %s36
    %s37 = sphi 0, %s34
    %s38 = sphi 0, %s37
    %s54 = sphi 0, %s38
    %s62 = sphi 0, %s64
    %s65 = sphi 0, %s62
    %s66 = sphi 0, %s65
    %s82 = sphi 0, %s66
    %s86 = sphi 0, %s86
    %s88 = sphi 0, %s86
    %s89 = sphi 0, %s88
    %s103 = sphi 0, %s89
    %s107 = sphi 0, %s107
    %s109 = sphi 0, %s107
    %s110 = sphi 0, %s109
    %s124 = sphi 0, %s110
    %s132 = sphi 0, %s134
    %s135 = sphi 0, %s132
    %s136 = sphi 0, %s135
    %s152 = sphi 0, %s136
  $region4: #{_resblock_impl.1} parent=0 // loop_header_branch
    %13 = sbr.rel (%p11) target = $region8
  $region5: #{_resblock_impl.1} parent=0 // loop_body
    %s15 = ssub.s32 %s10, 1
    %s16 = ssub.s32 %s10, 2
    %s23 = sadd.s32 1, %s18
    %p24 = scmp.ge.s32.totalorder %s23, 1
    %s25 = scalar_select %p24, 0, %s23
    %s26 = sadd.s32 1, %s17
    %s27 = scalar_select %p24, %s26, %s17
    %p28 = scmp.ge.s32.totalorder %s27, 2
    %s29 = scalar_select %p28, 0, %s27
    %s30 = ssub.s32 %s17, %s29
    %s31 = ssub.s32 %s18, %s25
    %s32 = sor.u32 %s30, %s31
    %p33 = scmp.eq.s32.totalorder %s32, 0
    %s35 = sadd.s32 %s34, 1
    %s36 = scalar_select %p33, %s34, %s35
    %p39 = pneg %p33
    %p40 = scmp.eq.s32.totalorder %s10, 1
    %p41 = por %p39, %p40
    %p42 = scmp.ne.s32.totalorder %s34, %s37
    %p43 = scmp.eq.s32.totalorder %s10, 0
    %p44 = por %p42, %p43
    %p45 = scmp.ne.s32.totalorder %s34, %s37
    %p46 = scmp.eq.s32.totalorder %s15, 1
    %p47 = por %p45, %p46
    %p48 = scmp.ne.s32.totalorder %s37, %s38
    %p49 = scmp.eq.s32.totalorder %s15, 0
    %p50 = por %p48, %p49
    %p51 = scmp.ne.s32.totalorder %s37, %s38
    %p52 = scmp.eq.s32.totalorder %s16, 1
    %p53 = por %p51, %p52
    %p55 = scmp.ne.s32.totalorder %s38, %s54
    %p56 = scmp.eq.s32.totalorder %s16, 0
    %p57 = por %p55, %p56
    %s58 = ssub.s32 %s17, %s29
    %s59 = ssub.s32 %s18, %s25
    %s60 = sor.u32 %s58, %s59
    %p61 = scmp.eq.s32.totalorder %s60, 0
    %s63 = sadd.s32 %s62, 1
    %s64 = scalar_select %p61, %s62, %s63
    %p67 = pneg %p61
    %p68 = scmp.eq.s32.totalorder %s10, 1
    %p69 = por %p67, %p68
    %p70 = scmp.ne.s32.totalorder %s62, %s65
    %p71 = scmp.eq.s32.totalorder %s10, 0
    %p72 = por %p70, %p71
    %p73 = scmp.ne.s32.totalorder %s62, %s65
    %p74 = scmp.eq.s32.totalorder %s15, 1
    %p75 = por %p73, %p74
    %p76 = scmp.ne.s32.totalorder %s65, %s66
    %p77 = scmp.eq.s32.totalorder %s15, 0
    %p78 = por %p76, %p77
    %p79 = scmp.ne.s32.totalorder %s65, %s66
    %p80 = scmp.eq.s32.totalorder %s16, 1
    %p81 = por %p79, %p80
    %p83 = scmp.ne.s32.totalorder %s66, %s82
    %p84 = scmp.eq.s32.totalorder %s16, 0
    %p85 = por %p83, %p84
    %s87 = sadd.s32 %s86, 1
    %p90 = scmp.eq.s32.totalorder %s10, 1
    %p91 = scmp.ne.s32.totalorder %s86, %s88
    %p92 = scmp.eq.s32.totalorder %s10, 0
    %p93 = por %p91, %p92
    %p94 = scmp.ne.s32.totalorder %s86, %s88
    %p95 = scmp.eq.s32.totalorder %s15, 1
    %p96 = por %p94, %p95
    %p97 = scmp.ne.s32.totalorder %s88, %s89
    %p98 = scmp.eq.s32.totalorder %s15, 0
    %p99 = por %p97, %p98
    %p100 = scmp.ne.s32.totalorder %s88, %s89
    %p101 = scmp.eq.s32.totalorder %s16, 1
    %p102 = por %p100, %p101
    %p104 = scmp.ne.s32.totalorder %s89, %s103
    %p105 = scmp.eq.s32.totalorder %s16, 0
    %p106 = por %p104, %p105
    %s108 = sadd.s32 %s107, 1
    %p111 = scmp.eq.s32.totalorder %s10, 1
    %p112 = scmp.ne.s32.totalorder %s107, %s109
    %p113 = scmp.eq.s32.totalorder %s10, 0
    %p114 = por %p112, %p113
    %p115 = scmp.ne.s32.totalorder %s107, %s109
    %p116 = scmp.eq.s32.totalorder %s15, 1
    %p117 = por %p115, %p116
    %p118 = scmp.ne.s32.totalorder %s109, %s110
    %p119 = scmp.eq.s32.totalorder %s15, 0
    %p120 = por %p118, %p119
    %p121 = scmp.ne.s32.totalorder %s109, %s110
    %p122 = scmp.eq.s32.totalorder %s16, 1
    %p123 = por %p121, %p122
    %p125 = scmp.ne.s32.totalorder %s110, %s124
    %p126 = scmp.eq.s32.totalorder %s16, 0
    %p127 = por %p125, %p126
    %s128 = ssub.s32 %s17, %s29
    %s129 = ssub.s32 %s18, %s25
    %s130 = sor.u32 %s128, %s129
    %p131 = scmp.eq.s32.totalorder %s130, 0
    %s133 = sadd.s32 %s132, 1
    %s134 = scalar_select %p131, %s132, %s133
    %p137 = pneg %p131
    %p138 = scmp.eq.s32.totalorder %s10, 1
    %p139 = por %p137, %p138
    %p140 = scmp.ne.s32.totalorder %s132, %s135
    %p141 = scmp.eq.s32.totalorder %s10, 0
    %p142 = por %p140, %p141
    %p143 = scmp.ne.s32.totalorder %s132, %s135
    %p144 = scmp.eq.s32.totalorder %s15, 1
    %p145 = por %p143, %p144
    %p146 = scmp.ne.s32.totalorder %s135, %s136
    %p147 = scmp.eq.s32.totalorder %s15, 0
    %p148 = por %p146, %p147
    %p149 = scmp.ne.s32.totalorder %s135, %s136
    %p150 = scmp.eq.s32.totalorder %s16, 1
    %p151 = por %p149, %p150
    %p153 = scmp.ne.s32.totalorder %s136, %s152
    %p154 = scmp.eq.s32.totalorder %s16, 0
    %p155 = por %p153, %p154
    %p156 = scmp.le.s32.totalorder 1, %s10
    %p157 = scmp.lt.s32.totalorder %s10, 3
    %p158 = pnand %p156, %p157
    %p159 = pneg %p158
    // Predicated region
    $region9: #{_resblock_impl.1} parent=5 // pred_check
      _
    $region10: #{_resblock_impl.1} parent=5 // pred_check_branch
      %161 = sbr.rel (%p158) target = $region12
    $region11: #{_resblock_impl.1} parent=5 // pred_region
      %s162 = ssub.s32 %s10, 1
      // Predicated region
      $region13: #{_resblock_impl.1} parent=11 // pred_check
        %p163 = pneg %p99
      $region14: #{_resblock_impl.1} parent=11 // pred_check_branch
        %165 = sbr.rel (%p163) target = $region16
      $region15: #{_resblock_impl.1} parent=11 // pred_region
        _
      $region16: #{_resblock_impl.1} parent=11 // pred_fallthru
        _
      // Predicated region
      $region17: #{_resblock_impl.1} parent=11 // pred_check
        %p166 = pneg %p120
      $region18: #{_resblock_impl.1} parent=11 // pred_check_branch
        %168 = sbr.rel (%p166) target = $region20
      $region19: #{_resblock_impl.1} parent=11 // pred_region
        _
      $region20: #{_resblock_impl.1} parent=11 // pred_fallthru
        _
    $region12: #{_resblock_impl.1} parent=5 // pred_fallthru
      _
    %p169 = scmp.lt.s32.totalorder %s10, 2
    // Predicated region
    $region21: #{_resblock_impl.1} parent=5 // pred_check
      %p170 = pneg %p169
    $region22: #{_resblock_impl.1} parent=5 // pred_check_branch
      %172 = sbr.rel (%p170) target = $region24
    $region23: #{_resblock_impl.1} parent=5 // pred_region
      // Predicated region
      $region25: #{_resblock_impl.1} parent=23 // pred_check
        %p173 = pneg %p44
      $region26: #{_resblock_impl.1} parent=23 // pred_check_branch
        %175 = sbr.rel (%p173) target = $region28
      $region27: #{_resblock_impl.1} parent=23 // pred_region
        %p176 = scmp.lt.s32.totalorder %s17, 1
        %s177 = scalar_select %p176, %s17, 1
        %p178 = scmp.lt.s32.totalorder %s18, 0
        %s179 = scalar_select %p178, %s18, 0
        %s180 = smul.addr %s177, 2
        %s181 = sadd.s32 %s179, %s180
        %s182 = smul.addr %s181, 8
        %s183 = scalar_lea.vmem %s0, %s182
      $region28: #{_resblock_impl.1} parent=23 // pred_fallthru
        _
      // Predicated region
      $region29: #{_resblock_impl.1} parent=23 // pred_check
        %p184 = pneg %p72
      $region30: #{_resblock_impl.1} parent=23 // pred_check_branch
        %186 = sbr.rel (%p184) target = $region32
      $region31: #{_resblock_impl.1} parent=23 // pred_region
        %p187 = scmp.lt.s32.totalorder %s17, 1
        %s188 = scalar_select %p187, %s17, 1
        %p189 = scmp.lt.s32.totalorder %s18, 0
        %s190 = scalar_select %p189, %s18, 0
        %s191 = smul.addr %s190, 2
        %s192 = smul.addr %s188, 2
        %s193 = sadd.s32 %s191, %s192
        %s194 = smul.addr %s193, 8
        %s195 = scalar_lea.vmem %s1, %s194
      $region32: #{_resblock_impl.1} parent=23 // pred_fallthru
        _
    $region24: #{_resblock_impl.1} parent=5 // pred_fallthru
      _
    %p196 = scmp.le.s32.totalorder 1, %s10
    %p197 = scmp.lt.s32.totalorder %s10, 3
    %p198 = pnand %p196, %p197
    %p199 = pneg %p198
    // Predicated region
    $region33: #{_resblock_impl.1} parent=5 // pred_check
      _
    $region34: #{_resblock_impl.1} parent=5 // pred_check_branch
      %201 = sbr.rel (%p198) target = $region36
    $region35: #{_resblock_impl.1} parent=5 // pred_region
      %s202 = ssub.s32 %s10, 1
      %p203 = scmp.lt.s32.totalorder %s19, 1
      %s204 = scalar_select %p203, %s19, 1
      %p205 = scmp.lt.s32.totalorder %s20, 0
      %s206 = scalar_select %p205, %s20, 0
      %s207 = smul.addr %s204, 2
      %s208 = sadd.s32 %s206, %s207
      %s209 = smul.addr %s208, 8
      %s210 = scalar_lea.vmem %s0, %s209
      %p211 = pneg %p50
      %p212 = pneg %p47
      %p213 = scmp.lt.s32.totalorder %s19, 1
      %s214 = scalar_select %p213, %s19, 1
      %p215 = scmp.lt.s32.totalorder %s20, 0
      %s216 = scalar_select %p215, %s20, 0
      %s217 = smul.addr %s216, 2
      %s218 = smul.addr %s214, 2
      %s219 = sadd.s32 %s217, %s218
      %s220 = smul.addr %s219, 8
      %s221 = scalar_lea.vmem %s1, %s220
      %p222 = pneg %p78
      %p223 = pneg %p75
      %p224 = pneg %p99
      %p225 = pneg %p96
      %p226 = pneg %p120
      %p227 = pneg %p117
      %p228 = pneg %p148
      %p229 = pneg %p145
      %p230 = scmp.lt.s32.totalorder %s19, 1
      %s231 = scalar_select %p230, %s19, 1
      %p232 = scmp.lt.s32.totalorder %s20, 0
      %s233 = scalar_select %p232, %s20, 0
      %s234 = smul.addr %s231, 2
      %s235 = sadd.s32 %s233, %s234
      %s236 = smul.addr %s235, 8
      %s237 = scalar_lea.vmem %s4, %s236
      %p238 = scmp.lt.s32.totalorder %s19, 1
      %s239 = scalar_select %p238, %s19, 1
      %p240 = scmp.lt.s32.totalorder %s20, 0
      %s241 = scalar_select %p240, %s20, 0
      %s242 = smul.addr %s239, 2
      %s243 = sadd.s32 %s241, %s242
      %s244 = smul.addr %s243, 8
      %s245 = scalar_lea.vmem %s0, %s244
      %p246 = scmp.lt.s32.totalorder %s19, 1
      %s247 = scalar_select %p246, %s19, 1
      %p248 = scmp.lt.s32.totalorder %s20, 0
      %s249 = scalar_select %p248, %s20, 0
      %s250 = smul.addr %s249, 2
      %s251 = smul.addr %s247, 2
      %s252 = sadd.s32 %s250, %s251
      %s253 = smul.addr %s252, 8
      %s254 = scalar_lea.vmem %s1, %s253
      %p255 = scmp.lt.s32.totalorder %s19, 1
      %s256 = scalar_select %p255, %s19, 1
      %p257 = scmp.lt.s32.totalorder %s20, 0
      %s258 = scalar_select %p257, %s20, 0
      %s259 = smul.addr %s256, 2
      %s260 = sadd.s32 %s258, %s259
      %s261 = smul.addr %s260, 8
      %s262 = scalar_lea.vmem %s4, %s261
      %v264 = vld [vmem:[%s245] sm:$0xff]
      %v265 = vld [vmem:[%s245 + $0x8] sm:$0xff]
      %v266 = vmax.f32 %v264, 0.0
      %v267 = vmax.f32 %v265, 0.0
      %v268 = vld [vmem:[%s254] sm:$0xff]
      %v269 = vld [vmem:[%s254 + $0x8] sm:$0xff]
      %v270 = vmax.f32 %v268, 0.0
      %v271 = vmax.f32 %v269, 0.0
      %272 = vrot.lane.b32.xlu0 %v266, 1
      %v273 = vpop.permute.xlu0 %272
      %274 = vrot.lane.b32.xlu0 %v267, 1
      %v275 = vpop.permute.xlu0 %274
      %v276 = vpack.c.bf16 %v275, %v273
      %277 = vst [vmem:[#allocation2] sm:$0xff] %v276
      %v278 = vpack.c.bf16 %v271, %v270
      %vm279 = vcmask 7168
      %280 = vst.msk [vmem:[#allocation2] sm:$0xff] %vm279, %v278
      %v281 = vpack.c.bf16 %v267, %v266
      %282 = vst [vmem:[#allocation2 + $0x8] sm:$0xff] %v281
      %283 = vrot.lane.b32.xlu0 %v266, 127
      %v284 = vpop.permute.xlu0 %283
      %285 = vrot.lane.b32.xlu0 %v267, 127
      %v286 = vpop.permute.xlu0 %285
      %v287 = vpack.c.bf16 %v286, %v284
      %288 = vst [vmem:[#allocation2 + $0x10] sm:$0xff] %v287
      %290 = vrot.lane.b32.xlu0 %v278, 126
      %v291 = vpop.permute.xlu0 %290
      %vm293 = vcmask 1048568
      %294 = vst.msk [vmem:[#allocation2 + $0x10] sm:$0xff] %vm293, %v291
      %v295 = vld [vmem:[%s2] sm:$0xf]
      %v296 = vld [vmem:[%s2 + $0x4] sm:$0xf]
      %v297 = vld [vmem:[#allocation2] sm:$0xff]
      %v298 = vld [vmem:[#allocation2 + $0x8] sm:$0xff]
      %v299 = vld [vmem:[#allocation2 + $0x10] sm:$0xff]
      %v300 = vld [vmem:[%s3] sm:$0xff]
      %v301 = vld [vmem:[%s3 + $0x8] sm:$0xff]
      %303 = vset.pattern.permute.xlu0 0
      %304 = vperm.xlu0 %303, %v300
      %v305 = vpop.permute.xlu0 %304
      %308 = vset.pattern.permute.xlu0 0
      %309 = vperm.xlu0 %308, %v301
      %v310 = vpop.permute.xlu0 %309
      %v314 = vunpack.c.l.b16 %v295
      %v315 = vunpack.c.l.b16 %v296
      %v316 = vpack.c.b16 %v315, %v314
      %vm317 = vcmask 392192
      %v319 = vsel %vm317, %v316, 0
      %321 = vmatprep.subr.bf16.mxu0 0
      %322 = vmatpush1.bf16.msra.mxu0 %v297
      %323 = vmatprep.subr.bf16.mxu0 0
      %324 = vmatpush1.bf16.msra.mxu0 %v298
      %325 = vmatprep.subr.bf16.mxu0 0
      %326 = vmatpush1.bf16.msra.mxu0 %v299
      %327 = vmatprep.subr.bf16.mxu0 0
      %328 = vmatpush1.bf16.msra.mxu0 0
      %329 = vmatprep.subr.bf16.mxu0 0
      %330 = vmatpush1.bf16.msra.mxu0 0
      %331 = vmatprep.subr.bf16.mxu0 0
      %332 = vmatpush1.bf16.msra.mxu0 0
      %333 = vmatprep.subr.bf16.mxu0 0
      %334 = vmatpush1.bf16.msra.mxu0 0
      %335 = vmatprep.subr.bf16.mxu0 0
      %336 = vmatpush1.bf16.msra.mxu0 0
      %337 = vmatprep.subr.bf16.mxu0 0
      %338 = vmatpush1.bf16.msra.mxu0 0
      %339 = vmatprep.subr.bf16.mxu0 0
      %340 = vmatpush1.bf16.msra.mxu0 0
      %341 = vmatprep.subr.bf16.mxu0 0
      %342 = vmatpush1.bf16.msra.mxu0 0
      %343 = vmatprep.subr.bf16.mxu0 0
      %344 = vmatpush1.bf16.msra.mxu0 0
      %345 = vmatprep.subr.bf16.mxu0 0
      %346 = vmatpush1.bf16.msra.mxu0 0
      %347 = vmatprep.subr.bf16.mxu0 0
      %348 = vmatpush1.bf16.msra.mxu0 0
      %349 = vmatprep.subr.bf16.mxu0 0
      %350 = vmatpush1.bf16.msra.mxu0 0
      %351 = vmatprep.subr.bf16.mxu0 0
      %352 = vmatpush1.bf16.msra.mxu0 0
      %353 = vmatprep.mubr.bf16.mxu0 0
      %354 = vmatmul.mubr.bf16.gmra.mrb[0].mxu0 %v319
      %v355 = vpop.f32.mrb[0].mxu0
      %v356 = vadd.f32 %v305, %v355
      %v357 = vpop.f32.mrb[0].mxu0
      %v358 = vpop.f32.mrb[0].mxu0
      %v359 = vadd.f32 %v310, %v358
      %v360 = vpop.f32.mrb[0].mxu0
      %361 = vdwg.mxu0
      %v362 = vmul.f32 %v356, 0.3
      %v363 = vmul.f32 %v359, 0.3
      %v364 = vadd.f32 %v264, %v362
      %v365 = vadd.f32 %v265, %v363
      %366 = vst [vmem:[%s262] sm:$0xff] %v364
      %367 = vst [vmem:[%s262 + $0x8] sm:$0xff] %v365
      %p368 = scmp.lt.s32.totalorder %s19, 1
      %s369 = scalar_select %p368, %s19, 1
      %p370 = scmp.lt.s32.totalorder %s20, 0
      %s371 = scalar_select %p370, %s20, 0
      %s372 = smul.addr %s369, 2
      %s373 = sadd.s32 %s371, %s372
      %s374 = smul.addr %s373, 8
      %s375 = scalar_lea.vmem %s4, %s374
      // Predicated region
      $region37: #{_resblock_impl.1} parent=35 // pred_check
        %p376 = pneg %p145
      $region38: #{_resblock_impl.1} parent=35 // pred_check_branch
        %378 = sbr.rel (%p376) target = $region40
      $region39: #{_resblock_impl.1} parent=35 // pred_region
        _
      $region40: #{_resblock_impl.1} parent=35 // pred_fallthru
        _
    $region36: #{_resblock_impl.1} parent=5 // pred_fallthru
      _
    %p379 = scmp.le.s32.totalorder 2, %s10
    // Predicated region
    $region41: #{_resblock_impl.1} parent=5 // pred_check
      %p380 = pneg %p379
    $region42: #{_resblock_impl.1} parent=5 // pred_check_branch
      %382 = sbr.rel (%p380) target = $region44
    $region43: #{_resblock_impl.1} parent=5 // pred_region
      %s383 = ssub.s32 %s10, 2
      // Predicated region
      $region45: #{_resblock_impl.1} parent=43 // pred_check
        %p384 = pneg %p151
      $region46: #{_resblock_impl.1} parent=43 // pred_check_branch
        %386 = sbr.rel (%p384) target = $region48
      $region47: #{_resblock_impl.1} parent=43 // pred_region
        %p387 = scmp.lt.s32.totalorder %s21, 1
        %s388 = scalar_select %p387, %s21, 1
        %p389 = scmp.lt.s32.totalorder %s22, 0
        %s390 = scalar_select %p389, %s22, 0
        %s391 = smul.addr %s388, 2
        %s392 = sadd.s32 %s390, %s391
        %s393 = smul.addr %s392, 8
        %s394 = scalar_lea.vmem %s4, %s393
      $region48: #{_resblock_impl.1} parent=43 // pred_fallthru
        _
    $region44: #{_resblock_impl.1} parent=5 // pred_fallthru
      _
  $region6: #{_resblock_impl.1} parent=0 // loop_footer
    %s14 = sadd.s32 1, %s10
  $region7: #{_resblock_impl.1} parent=0 // loop_footer_branch
    %9 = sbr.rel target = $region3
  $region8: #{_resblock_impl.1} parent=0 // loop_exit
    _

</llo_original>
